<compile_context>
chip_gen: v7x
topology: tpu7x:2x2x1
jax: 0.10.0
libtpu: 0.0.40
codegen_flags: <defaults>
</compile_context>

<pallas_src>
from functools import partial

import jax
import jax.numpy as jnp
from jax.experimental import pallas as pl
from jax.experimental.pallas import tpu as pltpu


def _trivial_augment_kernel(params_ref, img_ref, out_ref, *, inv_count: float):
    """One grid step == B_TILE images, each a lane-dense (P, 128) f32 slab.

    params_ref : SMEM f32 (4, N_pad) -- rows = scale, off0, mcoeff, thresh.
    img_ref    : VMEM f32 (B_TILE, P, 128)
    out_ref    : VMEM f32 (B_TILE, P, 128)
    """
    bt = img_ref.shape[0]
    base = pl.program_id(0) * bt

    def body(j, carry):
        b = base + j
        scale = params_ref[0, b]
        off0 = params_ref[1, b]
        mcoeff = params_ref[2, b]
        thresh = params_ref[3, b]

        x = img_ref[j]                                          # (P, 128)
        # Per-image mean (only has non-zero weight for Contrast).  Padding is
        # zeros, so dividing by the true pixel count keeps the mean exact.
        row = jnp.sum(x, axis=1, keepdims=True)                 # (P, 1)
        mean = jnp.sum(row, axis=0, keepdims=True) * inv_count  # (1, 1)
        offset = off0 + mcoeff * mean                           # (1, 1)

        affine = jnp.clip(x * scale + offset, 0.0, 1.0)
        out_ref[j] = jnp.where(x >= thresh, 1.0 - x, affine)    # solarize branch
        return carry

    jax.lax.fori_loop(0, bt, body, 0, unroll=(bt <= 8))


def _fused_params(n: int, key: jax.Array):
    """Sample (op, magnitude, direction) per image and fold into
    (scale, off0, mcoeff, thresh) for the fused kernel form."""
    k_op, k_mag, k_sign = jax.random.split(key, 3)
    op_idx = jax.random.randint(k_op, (n,), 0, 5, dtype=jnp.int32)
    mag = jax.random.uniform(k_mag, (n,), dtype=jnp.float32)
    sign = jnp.where(jax.random.uniform(k_sign, (n,)) < 0.5, 1.0, -1.0)
    factor = 1.0 + sign * 0.99 * mag

    scale = jnp.where(op_idx == 4, -1.0,
            jnp.where((op_idx == 1) | (op_idx == 2), factor, 1.0))
    off0 = jnp.where(op_idx == 4, 1.0, 0.0)
    mcoeff = jnp.where(op_idx == 2, 1.0 - factor, 0.0)
    thresh = jnp.where(op_idx == 3, 1.0 - mag, 2.0)
    return (scale.astype(jnp.float32), off0.astype(jnp.float32),
            mcoeff.astype(jnp.float32), thresh.astype(jnp.float32))


def trivial_augment_transform(img: jax.Array, key: jax.Array,
                              *, block_bytes_target: int = 1 << 20) -> jax.Array:
    """img: (N, C, H, W) float in [0, 1]. Returns augmented images, same shape/dtype."""
    n, c, h, w = img.shape
    lane, sub = 128, 8
    flat = c * h * w
    flat_pad = -(-flat // (lane * sub)) * (lane * sub)   # multiple of 8*128
    p = flat_pad // lane
    per_img_bytes = flat_pad * 4

    # Images per grid step: amortize per-step overhead while keeping the
    # double-buffered in+out blocks (~4 * block) far below the scoped-VMEM
    # default on all generations.
    bt = int(max(1, min(n, block_bytes_target // per_img_bytes)))
    n_pad = -(-n // bt) * bt
    pad_n = n_pad - n

    scale, off0, mcoeff, thresh = _fused_params(n, key)
    pad1 = lambda a, v: jnp.pad(a, (0, pad_n), constant_values=v)
    params = jnp.stack([pad1(scale, 1.0), pad1(off0, 0.0),
                        pad1(mcoeff, 0.0), pad1(thresh, 2.0)], axis=0)  # (4, N_pad)

    slab = img.reshape(n, flat).astype(jnp.float32)
    if pad_n or flat_pad != flat:                        # no-op pad elided by XLA
        slab = jnp.pad(slab, ((0, pad_n), (0, flat_pad - flat)))
    slab = slab.reshape(n_pad, p, lane)                  # lane-dense layout

    kernel = partial(_trivial_augment_kernel, inv_count=1.0 / float(flat))
    out = pl.pallas_call(
        kernel,
        out_shape=jax.ShapeDtypeStruct((n_pad, p, lane), jnp.float32),
        grid=(n_pad // bt,),
        in_specs=[
            pl.BlockSpec(memory_space=pltpu.MemorySpace.SMEM),    # per-image scalars
            pl.BlockSpec((bt, p, lane), lambda i: (i, 0, 0)),     # image slabs
        ],
        out_specs=pl.BlockSpec((bt, p, lane), lambda i: (i, 0, 0)),
        compiler_params=pltpu.CompilerParams(
            dimension_semantics=("parallel",)),   # independent steps -> both TCs on v7x
    )(params, slab)

    out = out.reshape(n_pad, flat_pad)[:n, :flat]
    # TODO(synk): geometric ops (ShearX/Y, TranslateX/Y, Rotate) and histogram
    # ops (AutoContrast, Equalize, Posterize, Sharpness, Color) from the full
    # TrivialAugment pool have no clean single-pass Pallas equivalent here.
    return out.reshape(n, c, h, w).astype(img.dtype)


if __name__ == "__main__":
    key = jax.random.PRNGKey(0)
    k_img, k_aug = jax.random.split(key)

    # Small image batch: N=2, C=4, H=16, W=16, values in [0, 1].
    img = jax.random.uniform(k_img, (2, 4, 16, 16), dtype=jnp.float32)

    out = jax.block_until_ready(trivial_augment_transform(img, k_aug))

    # Pure-JAX reference using the identical fused per-image parameters.
    s, o0, mc, th = _fused_params(img.shape[0], k_aug)
    mean = jnp.mean(img.reshape(img.shape[0], -1), axis=1)
    off = o0 + mc * mean
    s, off, th = (a[:, None, None, None] for a in (s, off, th))
    ref = jnp.where(img >= th, 1.0 - img, jnp.clip(img * s + off, 0.0, 1.0))

    assert out.shape == img.shape and out.dtype == img.dtype
    assert bool(jnp.all(jnp.isfinite(out)))
    assert bool(jnp.all((out >= 0.0) & (out <= 1.0)))
    assert bool(jnp.allclose(out, ref, atol=1e-5)), float(jnp.max(jnp.abs(out - ref)))
    print("KERNEL_OK")
</pallas_src>

<mosaic_0001>
module attributes {stable_mosaic.version = 11 : i64} {
  func.func @_trivial_augment_kernel(%arg0: i32, %arg1: memref<4x2xf32, #tpu.memory_space<smem>>, %arg2: memref<2x8x128xf32, #tpu.memory_space<vmem>>, %arg3: memref<2x8x128xf32, #tpu.memory_space<vmem>>) attributes {dimension_semantics = [#tpu.dimension_semantics<parallel>], iteration_bounds = array<i64: 1>, scalar_prefetch = 0 : i64, scratch_operands = 0 : i64, tpu.core_type = #tpu.core_type<tc>, window_params = [{transform_indices = @transform_0, window_bounds = array<i64: 4, 2>}, {transform_indices = @transform_1, window_bounds = array<i64: 2, 8, 128>}, {transform_indices = @transform_2, window_bounds = array<i64: 2, 8, 128>}]} {
    %c2_i32 = arith.constant 2 : i32
    %0 = arith.muli %arg0, %c2_i32 : i32
    %c0_i32 = arith.constant 0 : i32
    %1 = arith.addi %0, %c0_i32 : i32
    %c0 = arith.constant 0 : index
    %2 = arith.index_cast %1 : i32 to index
    %3 = memref.load %arg1[%c0, %2] : memref<4x2xf32, #tpu.memory_space<smem>>
    %c1 = arith.constant 1 : index
    %4 = arith.index_cast %1 : i32 to index
    %5 = memref.load %arg1[%c1, %4] : memref<4x2xf32, #tpu.memory_space<smem>>
    %c2 = arith.constant 2 : index
    %6 = arith.index_cast %1 : i32 to index
    %7 = memref.load %arg1[%c2, %6] : memref<4x2xf32, #tpu.memory_space<smem>>
    %c3 = arith.constant 3 : index
    %8 = arith.index_cast %1 : i32 to index
    %9 = memref.load %arg1[%c3, %8] : memref<4x2xf32, #tpu.memory_space<smem>>
    %10 = arith.index_cast %c0_i32 : i32 to index
    %c0_0 = arith.constant 0 : index
    %c0_1 = arith.constant 0 : index
    %11 = vector.load %arg2[%10, %c0_0, %c0_1] : memref<2x8x128xf32, #tpu.memory_space<vmem>>, vector<1x8x128xf32>
    %12 = vector.shape_cast %11 : vector<1x8x128xf32> to vector<8x128xf32>
    %cst = arith.constant dense<0.000000e+00> : vector<8xf32>
    %13 = vector.multi_reduction <add>, %12, %cst [1] : vector<8x128xf32> to vector<8xf32>
    %14 = vector.shape_cast %13 : vector<8xf32> to vector<8x1xf32>
    %cst_2 = arith.constant dense<0.000000e+00> : vector<1xf32>
    %15 = vector.multi_reduction <add>, %14, %cst_2 [0] : vector<8x1xf32> to vector<1xf32>
    %16 = vector.shape_cast %15 : vector<1xf32> to vector<1x1xf32>
    %cst_3 = arith.constant 9.765625E-4 : f32
    %17 = vector.broadcast %cst_3 : f32 to vector<1x1xf32>
    %18 = arith.mulf %16, %17 : vector<1x1xf32>
    %19 = vector.broadcast %7 : f32 to vector<1x1xf32>
    %20 = arith.mulf %19, %18 : vector<1x1xf32>
    %21 = vector.broadcast %5 : f32 to vector<1x1xf32>
    %22 = arith.addf %21, %20 : vector<1x1xf32>
    %23 = vector.broadcast %3 : f32 to vector<8x128xf32>
    %24 = arith.mulf %12, %23 : vector<8x128xf32>
    %25 = vector.broadcast %22 : vector<1x1xf32> to vector<8x128xf32>
    %26 = arith.addf %24, %25 : vector<8x128xf32>
    %cst_4 = arith.constant 0.000000e+00 : f32
    %cst_5 = arith.constant 1.000000e+00 : f32
    %27 = vector.broadcast %cst_4 : f32 to vector<8x128xf32>
    %28 = arith.maximumf %27, %26 : vector<8x128xf32>
    %29 = vector.broadcast %cst_5 : f32 to vector<8x128xf32>
    %30 = arith.minimumf %29, %28 : vector<8x128xf32>
    %31 = vector.broadcast %9 : f32 to vector<8x128xf32>
    %32 = arith.cmpf oge, %12, %31 : vector<8x128xf32>
    %cst_6 = arith.constant 1.000000e+00 : f32
    %33 = vector.broadcast %cst_6 : f32 to vector<8x128xf32>
    %34 = arith.subf %33, %12 : vector<8x128xf32>
    %35 = arith.select %32, %34, %30 : vector<8x128xi1>, vector<8x128xf32>
    %36 = arith.index_cast %c0_i32 : i32 to index
    %c0_7 = arith.constant 0 : index
    %c0_8 = arith.constant 0 : index
    %37 = vector.load %arg3[%36, %c0_7, %c0_8] : memref<2x8x128xf32, #tpu.memory_space<vmem>>, vector<1x8x128xf32>
    %38 = vector.shape_cast %37 : vector<1x8x128xf32> to vector<8x128xf32>
    %39 = vector.shape_cast %35 : vector<8x128xf32> to vector<1x8x128xf32>
    tpu.vector_store %arg3[%36, %c0_7, %c0_8], %39 {strides = array<i32>} : memref<2x8x128xf32, #tpu.memory_space<vmem>>, vector<1x8x128xf32>,
    %c1_i32 = arith.constant 1 : i32
    %40 = arith.addi %0, %c1_i32 : i32
    %c0_9 = arith.constant 0 : index
    %41 = arith.index_cast %40 : i32 to index
    %42 = memref.load %arg1[%c0_9, %41] : memref<4x2xf32, #tpu.memory_space<smem>>
    %c1_10 = arith.constant 1 : index
    %43 = arith.index_cast %40 : i32 to index
    %44 = memref.load %arg1[%c1_10, %43] : memref<4x2xf32, #tpu.memory_space<smem>>
    %c2_11 = arith.constant 2 : index
    %45 = arith.index_cast %40 : i32 to index
    %46 = memref.load %arg1[%c2_11, %45] : memref<4x2xf32, #tpu.memory_space<smem>>
    %c3_12 = arith.constant 3 : index
    %47 = arith.index_cast %40 : i32 to index
    %48 = memref.load %arg1[%c3_12, %47] : memref<4x2xf32, #tpu.memory_space<smem>>
    %49 = arith.index_cast %c1_i32 : i32 to index
    %c0_13 = arith.constant 0 : index
    %c0_14 = arith.constant 0 : index
    %50 = vector.load %arg2[%49, %c0_13, %c0_14] : memref<2x8x128xf32, #tpu.memory_space<vmem>>, vector<1x8x128xf32>
    %51 = vector.shape_cast %50 : vector<1x8x128xf32> to vector<8x128xf32>
    %cst_15 = arith.constant dense<0.000000e+00> : vector<8xf32>
    %52 = vector.multi_reduction <add>, %51, %cst_15 [1] : vector<8x128xf32> to vector<8xf32>
    %53 = vector.shape_cast %52 : vector<8xf32> to vector<8x1xf32>
    %cst_16 = arith.constant dense<0.000000e+00> : vector<1xf32>
    %54 = vector.multi_reduction <add>, %53, %cst_16 [0] : vector<8x1xf32> to vector<1xf32>
    %55 = vector.shape_cast %54 : vector<1xf32> to vector<1x1xf32>
    %cst_17 = arith.constant 9.765625E-4 : f32
    %56 = vector.broadcast %cst_17 : f32 to vector<1x1xf32>
    %57 = arith.mulf %55, %56 : vector<1x1xf32>
    %58 = vector.broadcast %46 : f32 to vector<1x1xf32>
    %59 = arith.mulf %58, %57 : vector<1x1xf32>
    %60 = vector.broadcast %44 : f32 to vector<1x1xf32>
    %61 = arith.addf %60, %59 : vector<1x1xf32>
    %62 = vector.broadcast %42 : f32 to vector<8x128xf32>
    %63 = arith.mulf %51, %62 : vector<8x128xf32>
    %64 = vector.broadcast %61 : vector<1x1xf32> to vector<8x128xf32>
    %65 = arith.addf %63, %64 : vector<8x128xf32>
    %cst_18 = arith.constant 0.000000e+00 : f32
    %cst_19 = arith.constant 1.000000e+00 : f32
    %66 = vector.broadcast %cst_18 : f32 to vector<8x128xf32>
    %67 = arith.maximumf %66, %65 : vector<8x128xf32>
    %68 = vector.broadcast %cst_19 : f32 to vector<8x128xf32>
    %69 = arith.minimumf %68, %67 : vector<8x128xf32>
    %70 = vector.broadcast %48 : f32 to vector<8x128xf32>
    %71 = arith.cmpf oge, %51, %70 : vector<8x128xf32>
    %cst_20 = arith.constant 1.000000e+00 : f32
    %72 = vector.broadcast %cst_20 : f32 to vector<8x128xf32>
    %73 = arith.subf %72, %51 : vector<8x128xf32>
    %74 = arith.select %71, %73, %69 : vector<8x128xi1>, vector<8x128xf32>
    %75 = arith.index_cast %c1_i32 : i32 to index
    %c0_21 = arith.constant 0 : index
    %c0_22 = arith.constant 0 : index
    %76 = vector.load %arg3[%75, %c0_21, %c0_22] : memref<2x8x128xf32, #tpu.memory_space<vmem>>, vector<1x8x128xf32>
    %77 = vector.shape_cast %76 : vector<1x8x128xf32> to vector<8x128xf32>
    %78 = vector.shape_cast %74 : vector<8x128xf32> to vector<1x8x128xf32>
    tpu.vector_store %arg3[%75, %c0_21, %c0_22], %78 {strides = array<i32>} : memref<2x8x128xf32, #tpu.memory_space<vmem>>, vector<1x8x128xf32>,
    %c2_i32_23 = arith.constant 2 : i32
    return
  }
  func.func @transform_0(%arg0: i32) -> (i32, i32) {
    %c0_i32 = arith.constant 0 : i32
    %c0_i32_0 = arith.constant 0 : i32
    %c0_i32_1 = arith.constant 0 : i32
    return %c0_i32, %c0_i32_0 : i32, i32
  }
  func.func @transform_1(%arg0: i32) -> (i32, i32, i32) {
    %c0_i32 = arith.constant 0 : i32
    %c0_i32_0 = arith.constant 0 : i32
    %c0_i32_1 = arith.constant 0 : i32
    return %arg0, %c0_i32, %c0_i32_0 : i32, i32, i32
  }
  func.func @transform_2(%arg0: i32) -> (i32, i32, i32) {
    %c0_i32 = arith.constant 0 : i32
    %c0_i32_0 = arith.constant 0 : i32
    %c0_i32_1 = arith.constant 0 : i32
    return %arg0, %c0_i32, %c0_i32_0 : i32, i32, i32
  }
}

</mosaic_0001>

<llo_original>
// kernel: tpu_custom_call.1
$region0: #{tpu_custom_call.1}
  #allocation0 [shape = 'u32[]', space=smem, size = 0x4, offset = 0x4, fixed_abs, tag = 'smem constant byte address 0x4 - core index']
  #allocation1 [shape = 'u32[144,128]{1,0:T(1,128)}', space=vmem, size = 0x12000, scoped, tag = 'internal scratch']
  %s0 = inlined_call_operand.vmem [shape: f32[4,2], index: 0, kind: input, shape index: {}]
  %s1 = inlined_call_operand.hbm [shape: f32[2,8,128], index: 1, kind: input, shape index: {}]
  %s2 = inlined_call_operand.hbm [shape: f32[2,8,128], index: 2, kind: output, shape index: {}]
  %s3 = sld [smem:[#allocation0]]
  $region26: #{tpu_custom_call.1} parent=0
    _
  %s5 = ssub.s32 1, %s3
  %s6 = scalar_select 0, %s5, %s3
  $region1: #{tpu_custom_call.1} parent=0
    #allocation2 [shape = 'u8[2048]{0}', space=smem, size = 0x800, scoped, tag = 'input window, operand 0, single buffered']
    #allocation3 [shape = 's32[1]{0}', space=sflag, size = 0x4, scoped, tag = 'scoped memory for tpu_custom_call.1']
    #allocation4 [shape = 's32[1]{0}', space=sflag, size = 0x4, scoped, tag = 'scoped memory for tpu_custom_call.1']
    #allocation5 [shape = 's32[1]{0}', space=sflag, size = 0x4, scoped, tag = 'scoped memory for tpu_custom_call.1']
    #allocation6 [shape = 'u8[8192]{0}', space=vmem, size = 0x2000, scoped, tag = 'input window, operand 1, single buffered']
    #allocation7 [shape = 'u8[8192]{0}', space=vmem, size = 0x2000, scoped, tag = 'output window, operand 0, single buffered']
    %7 = vsyncpa [#allocation5], 0
    %8 = vsyncpa [#allocation3], 0
    %9 = vsyncpa [#allocation4], 0
    // Predicated region
    $region2: #{tpu_custom_call.1} parent=1 // pred_check
      _
    $region3: #{tpu_custom_call.1} parent=1 // pred_check_branch
      %11 = sbr.rel (0) target = $region5
    $region4: #{tpu_custom_call.1} parent=1 // pred_region
      %s13 = ssub.s32 64, 64
      %14 = vsyncadd [#allocation5], %s13
      %s16 = sshll.u32 %s0, 4
      %s17 = int_to_ptr.vmem [resolvable:$true] %s16
      %19 = dma.vmem_to_smem %s17, 64, [#allocation2], [#allocation5]
    $region5: #{tpu_custom_call.1} parent=1 // pred_fallthru
      _
    // Predicated region
    $region6: #{tpu_custom_call.1} parent=1 // pred_check
      _
    $region7: #{tpu_custom_call.1} parent=1 // pred_check_branch
      %21 = sbr.rel (0) target = $region9
    $region8: #{tpu_custom_call.1} parent=1 // pred_region
      %s23 = ssub.s32 256, 256
      %24 = vsyncadd [#allocation3], %s23
      %s25 = sshll.u32 [#allocation6], 4
      %s26 = int_to_ptr.vmem [resolvable:$true] %s25
      %31 = dma.hbm_to_vmem [thread:$0]  %s1, 256, %s26, [#allocation3], 128, 128, 8
    $region9: #{tpu_custom_call.1} parent=1 // pred_fallthru
      _
    // Predicated region
    $region10: #{tpu_custom_call.1} parent=1 // pred_check
      _
    $region11: #{tpu_custom_call.1} parent=1 // pred_check_branch
      %33 = sbr.rel (0) target = $region13
    $region12: #{tpu_custom_call.1} parent=1 // pred_region
      %34 = dma.done [#allocation5], 64
    $region13: #{tpu_custom_call.1} parent=1 // pred_fallthru
      _
    // Predicated region
    $region14: #{tpu_custom_call.1} parent=1 // pred_check
      _
    $region15: #{tpu_custom_call.1} parent=1 // pred_check_branch
      %36 = sbr.rel (0) target = $region17
    $region16: #{tpu_custom_call.1} parent=1 // pred_region
      %37 = dma.done [#allocation3], 256
    $region17: #{tpu_custom_call.1} parent=1 // pred_fallthru
      _
    %38 = sfence
    %s39 = smul.u32 0, 2
    %s40 = sld [smem:[#allocation2 + %s39]]
    %s41 = sshra.s32 %s39, 7
    %s42 = sand.u32 %s39, 127
    %s43 = sadd.s32 %s41, 1
    %s44 = smul.u32 %s43, 128
    %s45 = sshra.s32 %s39, 7
    %s46 = sand.u32 %s39, 127
    %s47 = sadd.s32 %s44, %s46
    %s48 = sld [smem:[#allocation2 + %s47]]
    %s49 = sadd.s32 %s41, 2
    %s50 = smul.u32 %s49, 128
    %s51 = sadd.s32 %s50, %s46
    %s52 = sld [smem:[#allocation2 + %s51]]
    %s53 = sadd.s32 %s41, 3
    %s54 = smul.u32 %s53, 128
    %s55 = sadd.s32 %s54, %s46
    %s56 = sld [smem:[#allocation2 + %s55]]
    %v57 = vld [vmem:[#allocation6] sm:$0xff]
    %58 = vadd.xlane.f32.xlu0 %v57
    %v59 = vpop.xlane.xlu0 %58
    %v60 = vrot.slane %v59, 4
    %v61 = vadd.f32 %v59, %v60
    %v62 = vrot.slane %v61, 2
    %v63 = vadd.f32 %v61, %v62
    %v64 = vrot.slane %v63, 1
    %v65 = vadd.f32 %v63, %v64
    %v66 = vmul.f32 %v65, 0.0009765625
    %v67 = vstv %s52
    %v68 = vmul.f32 %v67, %v66
    %v69 = vstv %s48
    %v70 = vadd.f32 %v69, %v68
    %v71 = vstv %s40
    %v72 = vmul.f32 %v57, %v71
    %v73 = vadd.f32 %v72, %v70
    %v74 = vmax.f32 %v73, 0.0
    %v75 = vmin.f32 %v74, 1.0
    %v76 = vstv %s56
    %vm77 = vcmp.ge.f32.partialorder %v57, %v76
    %v78 = vsub.f32 1.0, %v57
    %v79 = vsel %vm77, %v78, %v75
    %80 = vst [vmem:[#allocation7] sm:$0xff] %v79
    %s81 = sadd.s32 %s39, 1
    %s82 = sld [smem:[#allocation2 + %s81]]
    %s83 = sshra.s32 %s81, 7
    %s84 = sand.u32 %s81, 127
    %s85 = sadd.s32 %s83, 1
    %s86 = smul.u32 %s85, 128
    %s87 = sshra.s32 %s81, 7
    %s88 = sand.u32 %s81, 127
    %s89 = sadd.s32 %s86, %s88
    %s90 = sld [smem:[#allocation2 + %s89]]
    %s91 = sadd.s32 %s83, 2
    %s92 = smul.u32 %s91, 128
    %s93 = sadd.s32 %s92, %s88
    %s94 = sld [smem:[#allocation2 + %s93]]
    %s95 = sadd.s32 %s83, 3
    %s96 = smul.u32 %s95, 128
    %s97 = sadd.s32 %s96, %s88
    %s98 = sld [smem:[#allocation2 + %s97]]
    %s99 = scalar_lea.vmem [#allocation6], 8
    %v100 = vld [vmem:[%s99] sm:$0xff]
    %101 = vadd.xlane.f32.xlu0 %v100
    %v102 = vpop.xlane.xlu0 %101
    %v103 = vrot.slane %v102, 4
    %v104 = vadd.f32 %v102, %v103
    %v105 = vrot.slane %v104, 2
    %v106 = vadd.f32 %v104, %v105
    %v107 = vrot.slane %v106, 1
    %v108 = vadd.f32 %v106, %v107
    %v109 = vmul.f32 %v108, 0.0009765625
    %v110 = vstv %s94
    %v111 = vmul.f32 %v110, %v109
    %v112 = vstv %s90
    %v113 = vadd.f32 %v112, %v111
    %v114 = vstv %s82
    %v115 = vmul.f32 %v100, %v114
    %v116 = vadd.f32 %v115, %v113
    %v117 = vmax.f32 %v116, 0.0
    %v118 = vmin.f32 %v117, 1.0
    %v119 = vstv %s98
    %vm120 = vcmp.ge.f32.partialorder %v100, %v119
    %v121 = vsub.f32 1.0, %v100
    %v122 = vsel %vm120, %v121, %v118
    %s123 = scalar_lea.vmem [#allocation7], 8
    %124 = vst [vmem:[%s123] sm:$0xff] %v122
    // Predicated region
    $region18: #{tpu_custom_call.1} parent=1 // pred_check
      _
    $region19: #{tpu_custom_call.1} parent=1 // pred_check_branch
      %126 = sbr.rel (0) target = $region21
    $region20: #{tpu_custom_call.1} parent=1 // pred_region
      %s128 = ssub.s32 256, 256
      %129 = vsyncadd [#allocation4], %s128
      %s130 = sshll.u32 [#allocation7], 4
      %s131 = int_to_ptr.vmem [resolvable:$true] %s130
      %136 = dma.vmem_to_hbm [thread:$0]  %s131, 256, %s2, [#allocation4], 128, 128, 8
    $region21: #{tpu_custom_call.1} parent=1 // pred_fallthru
      _
    // Predicated region
    $region22: #{tpu_custom_call.1} parent=1 // pred_check
      _
    $region23: #{tpu_custom_call.1} parent=1 // pred_check_branch
      %138 = sbr.rel (0) target = $region25
    $region24: #{tpu_custom_call.1} parent=1 // pred_region
      %139 = dma.done [#allocation4], 256
    $region25: #{tpu_custom_call.1} parent=1 // pred_fallthru
      _
    %140 = vsyncpa [#allocation3], 1
    %141 = vsyncpa [#allocation4], 1
    %142 = vsyncpa [#allocation5], 1

</llo_original>
